<compile_context>
chip_gen: v5e
topology: v5e:2x2
jax: 0.10.0
libtpu: 0.0.40
codegen_flags: <defaults>
</compile_context>

<pallas_src>
import functools

import jax
import jax.numpy as jnp
import numpy as np
from jax.experimental import pallas as pl
from jax.experimental.pallas import tpu as pltpu


def _round_up(x, m):
    return (x + m - 1) // m * m


# ----------------------------------------------------------------------------
# Pallas kernel: LayerNorm(stats only) -> (Linear+Tanh) -> (Linear+Tanh) -> Linear(H,1)
# One grid step processes a (TM, D) tile of the batch; weights stay resident.
# ----------------------------------------------------------------------------
def critic_kernel(x_ref, w_ref, vec_ref, out_ref, *, in_dim, hidden, act_dtype):
    D, H = in_dim, hidden
    TM = x_ref.shape[0]

    x = x_ref[...].astype(jnp.float32)                     # (TM, D), f32 math for LN

    # LayerNorm statistics (gamma/beta are folded into W1/b1 at pack time; eps=1e-5)
    mean = jnp.mean(x, axis=-1, keepdims=True)
    var = jnp.mean(jnp.square(x - mean), axis=-1, keepdims=True)
    xn = (x - mean) * jax.lax.rsqrt(var + 1e-5)

    # Resident parameter slabs (static slices -> zero-cost views)
    w1 = w_ref[:D, :]                                      # (D, H) bf16, gamma-folded
    w2 = w_ref[D:, :]                                      # (H, H) bf16
    b1 = vec_ref[0:1, :H]                                  # (1, H) f32, beta-folded
    b2 = vec_ref[1:2, :H]                                  # (1, H) f32
    w3 = vec_ref[2:3, :H]                                  # (1, H) critic_linear weight
    b3 = vec_ref[3:4, 0:1]                                 # (1, 1)

    # MLPLayer.fc1: Linear + Tanh (bf16 MXU operands, f32 accumulation)
    h = jnp.tanh((jnp.dot(xn.astype(jnp.bfloat16), w1,
                          preferred_element_type=jnp.float32) + b1).astype(act_dtype))
    # MLPLayer.fc2[0]: Linear + Tanh (layer_N == 1)
    h = jnp.tanh((jnp.dot(h.astype(jnp.bfloat16), w2,
                          preferred_element_type=jnp.float32) + b2).astype(act_dtype))

    # critic_linear: (1,H) x (TM,H)^T on the (otherwise idle) MXU -> lane-dense (1, TM)
    v = jax.lax.dot_general(w3.astype(jnp.bfloat16), h.astype(jnp.bfloat16),
                            (((1,), (1,)), ((), ())),
                            preferred_element_type=jnp.float32)          # (1, TM)
    out_ref[...] = (v + b3).reshape(1, 1, TM).astype(out_ref.dtype)


# ----------------------------------------------------------------------------
# Parameter packing: fold LayerNorm affine into fc1, collapse 9 tiny params into
# two DMA-friendly slabs.
# ----------------------------------------------------------------------------
def pack_params(params):
    D, H = params["w1"].shape
    w1 = params["w1"].astype(jnp.float32)                  # (D, H)  [in, out]
    w2 = params["w2"].astype(jnp.float32)                  # (H, H)
    gamma = jnp.reshape(params["ln_gamma"], (-1,)).astype(jnp.float32)   # (D,)
    beta = jnp.reshape(params["ln_beta"], (-1,)).astype(jnp.float32)     # (D,)

    # (z*gamma + beta) @ W1 + b1  ==  z @ (gamma[:,None]*W1) + (beta @ W1 + b1)
    w1_f = w1 * gamma[:, None]
    b1_f = beta @ w1 + jnp.reshape(params["b1"], (-1,))

    # bf16 weight slab: [W1'; W2] stacked along the input axis -> (D+H, H)
    w_slab = jnp.concatenate([w1_f, w2], axis=0).astype(jnp.bfloat16)

    def row(v):
        v = jnp.reshape(v, (-1,)).astype(jnp.float32)
        return jnp.pad(v, (0, H - v.shape[0]))

    vec_slab = jnp.stack([
        row(b1_f),               # row 0: b1'   (H)
        row(params["b2"]),       # row 1: b2    (H)
        row(params["w3"]),       # row 2: critic_linear weight (H)
        row(params["b3"]),       # row 3: b3    (1)
    ], axis=0)                   # (4, H) f32
    return w_slab, vec_slab, D, H


# ----------------------------------------------------------------------------
# Wrapper: mirrors Critic.forward(agent_id, share_inputs, rnn_hxs_critic, masks)
# ----------------------------------------------------------------------------
def critic_forward(agent_id, share_inputs, rnn_hxs_critic, masks, params, *,
                   block_rows=8192, min_grid=2, use_bf16_tanh=True):
    """Non-attn, non-recurrent Critic forward.

    block_rows: target batch tile (TM). Per-grid-step overhead is ~0.35 us, so keep
      TM large (~4k-8k, capped at B). VMEM capacity is NOT the constraint at this
      footprint (weight slab ~16 KiB, x tile = TM*D*dtype bytes, double-buffered);
      only for TM >= ~16k does the default scoped VMEM limit (16 MiB v5e /
      32 MiB v6e,v7x) matter — raise vmem_limit_bytes then instead of shrinking TM.
    min_grid: keep >= 2 so dimension_semantics=("parallel",) can shard the batch
      across both TensorCores on v7x (a single grid step serializes onto one TC).
    use_bf16_tanh: evaluate tanh in bf16 (EUP bf16 on v6e/v7x); set False on v5e.
    Pass share_inputs in bf16 to halve the dominant HBM stream; LN statistics are
    still computed in f32 (this quantizes the LN input slightly vs pure-f32 torch).
    """
    del agent_id, masks  # unused in the non-attn, non-recurrent path
    B, D_in = share_inputs.shape

    w_slab, vec_slab, D, H = pack_params(params)
    assert D == D_in

    # Tile selection: few big tiles, pad-free (ragged tail handled by Pallas).
    grid = max(min_grid, pl.cdiv(B, block_rows))
    TM = _round_up(pl.cdiv(B, grid), 8)
    grid = pl.cdiv(B, TM)            # rounding TM up may drop a grid step

    act_dtype = jnp.bfloat16 if use_bf16_tanh else jnp.float32
    kernel = functools.partial(critic_kernel, in_dim=D, hidden=H, act_dtype=act_dtype)

    out = pl.pallas_call(
        kernel,
        out_shape=jax.ShapeDtypeStruct((grid, 1, TM), jnp.float32),
        grid_spec=pltpu.PrefetchScalarGridSpec(
            num_scalar_prefetch=0,
            grid=(grid,),
            in_specs=[
                # activations stream per batch tile (last partial tile is clamped)
                pl.BlockSpec((TM, D), lambda i: (i, 0)),
                # parameter slabs pinned resident (constant block index)
                pl.BlockSpec((D + H, H), lambda i: (0, 0)),
                pl.BlockSpec((4, H), lambda i: (0, 0)),
            ],
            # lane-dense output row per tile
            out_specs=pl.BlockSpec((1, 1, TM), lambda i: (i, 0, 0)),
        ),
        compiler_params=pltpu.CompilerParams(
            dimension_semantics=("parallel",)),
    )(share_inputs, w_slab, vec_slab)

    value = out.reshape(grid * TM, 1)[:B]     # lane-dense slab -> (B, 1)
    return value, rnn_hxs_critic


# ----------------------------------------------------------------------------
# Deterministic parameter init (orthogonal weights, zero biases — as in module)
# ----------------------------------------------------------------------------
def orthogonal(key, out_dim, in_dim, gain=1.0):
    a = jax.random.normal(key, (max(out_dim, in_dim), min(out_dim, in_dim)),
                          dtype=jnp.float32)
    q, r = jnp.linalg.qr(a)
    q = q * jnp.sign(jnp.diagonal(r))
    if out_dim < in_dim:
        q = q.T
    return gain * q[:out_dim, :in_dim]


def make_params(key, share_obs_dim, hidden_size):
    k1, k2, k3 = jax.random.split(key, 3)
    # nn.Linear stores weight as [out, in]; kernel consumes [in, out] -> transpose.
    w1 = orthogonal(k1, hidden_size, share_obs_dim, gain=1.0).T       # fc1
    w2 = orthogonal(k2, hidden_size, hidden_size, gain=1.0).T         # fc_h clone
    w3 = orthogonal(k3, 1, hidden_size, gain=np.sqrt(2)).T            # critic_linear
    return {
        "ln_gamma": jnp.ones((1, share_obs_dim), jnp.float32),
        "ln_beta": jnp.zeros((1, share_obs_dim), jnp.float32),
        "w1": w1, "b1": jnp.zeros((1, hidden_size), jnp.float32),
        "w2": w2, "b2": jnp.zeros((1, hidden_size), jnp.float32),
        "w3": w3, "b3": jnp.zeros((1, 1), jnp.float32),
    }


def critic_reference(share_inputs, params, *, use_bf16_tanh=True):
    """Pure-JAX reference mirroring the kernel's packed/folded params and numerics."""
    w_slab, vec_slab, D, H = pack_params(params)
    act_dtype = jnp.bfloat16 if use_bf16_tanh else jnp.float32
    x = share_inputs.astype(jnp.float32)
    mean = jnp.mean(x, axis=-1, keepdims=True)
    var = jnp.mean(jnp.square(x - mean), axis=-1, keepdims=True)
    xn = (x - mean) * jax.lax.rsqrt(var + 1e-5)
    w1, w2 = w_slab[:D], w_slab[D:]
    b1, b2 = vec_slab[0:1, :H], vec_slab[1:2, :H]
    w3, b3 = vec_slab[2:3, :H], vec_slab[3, 0]
    h = jnp.tanh((jnp.dot(xn.astype(jnp.bfloat16), w1,
                          preferred_element_type=jnp.float32) + b1).astype(act_dtype))
    h = jnp.tanh((jnp.dot(h.astype(jnp.bfloat16), w2,
                          preferred_element_type=jnp.float32) + b2).astype(act_dtype))
    v = jax.lax.dot_general(w3.astype(jnp.bfloat16), h.astype(jnp.bfloat16),
                            (((1,), (1,)), ((), ())),
                            preferred_element_type=jnp.float32)          # (1, B)
    return (v + b3).T                                                     # (B, 1)


if __name__ == "__main__":
    # Small shapes consistent with the module:
    #   obs_shape[0] = 32, num_agents = 2 -> share_obs_dim = 64; hidden_size = 64.
    # batch = 40 with the default tile selection gives grid=2, TM=24: exercises
    # multiple grid steps plus the pad-free ragged last tile.
    batch, obs_dim, num_agents, hidden = 40, 32, 2, 64
    share_obs_dim = obs_dim * num_agents

    key = jax.random.PRNGKey(0)
    k_x, k_h, k_p = jax.random.split(key, 3)

    # Stream the activation in bf16 (halves the dominant HBM read inside the kernel).
    share_inputs = jax.random.normal(k_x, (batch, share_obs_dim),
                                     jnp.float32).astype(jnp.bfloat16)
    rnn_hxs_critic = jax.random.normal(k_h, (batch, hidden), jnp.float32)
    masks = jnp.ones((batch, 1), jnp.float32)
    agent_id = jnp.zeros((batch, 1), jnp.int32)
    params = make_params(k_p, share_obs_dim, hidden)

    # TODO(synk): attn (Encoder/MultiHeadAttention) and recurrent (GRU) branches of
    # Critic are disabled in this config and are not implemented as Pallas kernels.

    value, rnn_out = critic_forward(agent_id, share_inputs, rnn_hxs_critic,
                                    masks, params)
    jax.block_until_ready((value, rnn_out))

    ref = critic_reference(share_inputs, params)
    np.testing.assert_allclose(np.asarray(value), np.asarray(ref),
                               rtol=2e-3, atol=2e-3)
    assert value.shape == (batch, 1)
    assert rnn_out.shape == rnn_hxs_critic.shape

    print("KERNEL_OK")
</pallas_src>

<mosaic_0001>
module attributes {stable_mosaic.version = 11 : i64} {
  func.func @critic_kernel(%arg0: i32, %arg1: memref<24x64xbf16, #tpu.memory_space<vmem>>, %arg2: memref<128x64xbf16, #tpu.memory_space<vmem>>, %arg3: memref<4x64xf32, #tpu.memory_space<vmem>>, %arg4: memref<1x1x24xf32, #tpu.memory_space<vmem>>) attributes {dimension_semantics = [#tpu.dimension_semantics<parallel>], iteration_bounds = array<i64: 2>, scalar_prefetch = 0 : i64, scratch_operands = 0 : i64, tpu.core_type = #tpu.core_type<tc>, window_params = [{transform_indices = @transform_0, window_bounds = array<i64: 24, 64>}, {pipeline_mode = #tpu.pipeline_mode<synchronous>, transform_indices = @transform_1, window_bounds = array<i64: 128, 64>}, {pipeline_mode = #tpu.pipeline_mode<synchronous>, transform_indices = @transform_2, window_bounds = array<i64: 4, 64>}, {transform_indices = @transform_3, window_bounds = array<i64: 1, 1, 24>}]} {
    %c0 = arith.constant 0 : index
    %c0_0 = arith.constant 0 : index
    %0 = vector.load %arg1[%c0, %c0_0] : memref<24x64xbf16, #tpu.memory_space<vmem>>, vector<24x64xbf16>
    %1 = arith.extf %0 : vector<24x64xbf16> to vector<24x64xf32>
    %cst = arith.constant dense<0.000000e+00> : vector<24xf32>
    %2 = vector.multi_reduction <add>, %1, %cst [1] : vector<24x64xf32> to vector<24xf32>
    %3 = vector.shape_cast %2 : vector<24xf32> to vector<24x1xf32>
    %cst_1 = arith.constant 6.400000e+01 : f32
    %4 = vector.broadcast %cst_1 : f32 to vector<24x1xf32>
    %5 = arith.divf %3, %4 : vector<24x1xf32>
    %6 = vector.broadcast %5 : vector<24x1xf32> to vector<24x64xf32>
    %7 = arith.subf %1, %6 : vector<24x64xf32>
    %8 = arith.mulf %7, %7 : vector<24x64xf32>
    %cst_2 = arith.constant dense<0.000000e+00> : vector<24xf32>
    %9 = vector.multi_reduction <add>, %8, %cst_2 [1] : vector<24x64xf32> to vector<24xf32>
    %10 = vector.shape_cast %9 : vector<24xf32> to vector<24x1xf32>
    %cst_3 = arith.constant 6.400000e+01 : f32
    %11 = vector.broadcast %cst_3 : f32 to vector<24x1xf32>
    %12 = arith.divf %10, %11 : vector<24x1xf32>
    %13 = vector.broadcast %5 : vector<24x1xf32> to vector<24x64xf32>
    %14 = arith.subf %1, %13 : vector<24x64xf32>
    %cst_4 = arith.constant 9.99999974E-6 : f32
    %15 = vector.broadcast %cst_4 : f32 to vector<24x1xf32>
    %16 = arith.addf %12, %15 : vector<24x1xf32>
    %17 = math.rsqrt %16 : vector<24x1xf32>
    %18 = vector.broadcast %17 : vector<24x1xf32> to vector<24x64xf32>
    %19 = arith.mulf %14, %18 : vector<24x64xf32>
    %c0_5 = arith.constant 0 : index
    %c0_6 = arith.constant 0 : index
    %20 = vector.load %arg2[%c0_5, %c0_6] : memref<128x64xbf16, #tpu.memory_space<vmem>>, vector<64x64xbf16>
    %c64 = arith.constant 64 : index
    %c0_7 = arith.constant 0 : index
    %21 = vector.load %arg2[%c64, %c0_7] : memref<128x64xbf16, #tpu.memory_space<vmem>>, vector<64x64xbf16>
    %c0_8 = arith.constant 0 : index
    %c0_9 = arith.constant 0 : index
    %22 = vector.load %arg3[%c0_8, %c0_9] : memref<4x64xf32, #tpu.memory_space<vmem>>, vector<1x64xf32>
    %c1 = arith.constant 1 : index
    %c0_10 = arith.constant 0 : index
    %23 = vector.load %arg3[%c1, %c0_10] : memref<4x64xf32, #tpu.memory_space<vmem>>, vector<1x64xf32>
    %c2 = arith.constant 2 : index
    %c0_11 = arith.constant 0 : index
    %24 = vector.load %arg3[%c2, %c0_11] : memref<4x64xf32, #tpu.memory_space<vmem>>, vector<1x64xf32>
    %c3 = arith.constant 3 : index
    %c0_12 = arith.constant 0 : index
    %25 = vector.load %arg3[%c3, %c0_12] : memref<4x64xf32, #tpu.memory_space<vmem>>, vector<1x1xf32>
    %26 = arith.truncf %19 : vector<24x64xf32> to vector<24x64xbf16>
    %cst_13 = arith.constant dense<0.000000e+00> : vector<24x64xf32>
    %27 = tpu.matmul %26, %20, %cst_13 {dimension_numbers = #tpu.dot_dimension_numbers<[1], [0], [0], [1], [0, 0, 1, 1], [], []>} : vector<24x64xbf16>, vector<64x64xbf16>, vector<24x64xf32> -> vector<24x64xf32>
    %28 = vector.broadcast %22 : vector<1x64xf32> to vector<24x64xf32>
    %29 = arith.addf %27, %28 : vector<24x64xf32>
    %30 = arith.truncf %29 : vector<24x64xf32> to vector<24x64xbf16>
    %31 = math.tanh %30 : vector<24x64xbf16>
    %cst_14 = arith.constant dense<0.000000e+00> : vector<24x64xf32>
    %32 = tpu.matmul %31, %21, %cst_14 {dimension_numbers = #tpu.dot_dimension_numbers<[1], [0], [0], [1], [0, 0, 1, 1], [], []>} : vector<24x64xbf16>, vector<64x64xbf16>, vector<24x64xf32> -> vector<24x64xf32>
    %33 = vector.broadcast %23 : vector<1x64xf32> to vector<24x64xf32>
    %34 = arith.addf %32, %33 : vector<24x64xf32>
    %35 = arith.truncf %34 : vector<24x64xf32> to vector<24x64xbf16>
    %36 = math.tanh %35 : vector<24x64xbf16>
    %37 = arith.truncf %24 : vector<1x64xf32> to vector<1x64xbf16>
    %cst_15 = arith.constant dense<0.000000e+00> : vector<1x24xf32>
    %38 = tpu.matmul %37, %36, %cst_15 {dimension_numbers = #tpu.dot_dimension_numbers<[1], [1], [0], [0], [0, 0, 1, 0], [], []>} : vector<1x64xbf16>, vector<24x64xbf16>, vector<1x24xf32> -> vector<1x24xf32>
    %39 = vector.broadcast %25 : vector<1x1xf32> to vector<1x24xf32>
    %40 = arith.addf %38, %39 : vector<1x24xf32>
    %41 = vector.shape_cast %40 : vector<1x24xf32> to vector<1x1x24xf32>
    %c0_16 = arith.constant 0 : index
    %c0_17 = arith.constant 0 : index
    %c0_18 = arith.constant 0 : index
    %42 = vector.load %arg4[%c0_16, %c0_17, %c0_18] : memref<1x1x24xf32, #tpu.memory_space<vmem>>, vector<1x1x24xf32>
    tpu.vector_store %arg4[%c0_16, %c0_17, %c0_18], %41 {strides = array<i32>} : memref<1x1x24xf32, #tpu.memory_space<vmem>>, vector<1x1x24xf32>,
    return
  }
  func.func @transform_0(%arg0: i32) -> (i32, i32) {
    %c0_i32 = arith.constant 0 : i32
    %c0_i32_0 = arith.constant 0 : i32
    return %arg0, %c0_i32 : i32, i32
  }
  func.func @transform_1(%arg0: i32) -> (i32, i32) {
    %c0_i32 = arith.constant 0 : i32
    %c0_i32_0 = arith.constant 0 : i32
    %c0_i32_1 = arith.constant 0 : i32
    return %c0_i32, %c0_i32_0 : i32, i32
  }
  func.func @transform_2(%arg0: i32) -> (i32, i32) {
    %c0_i32 = arith.constant 0 : i32
    %c0_i32_0 = arith.constant 0 : i32
    %c0_i32_1 = arith.constant 0 : i32
    return %c0_i32, %c0_i32_0 : i32, i32
  }
  func.func @transform_3(%arg0: i32) -> (i32, i32, i32) {
    %c0_i32 = arith.constant 0 : i32
    %c0_i32_0 = arith.constant 0 : i32
    %c0_i32_1 = arith.constant 0 : i32
    return %arg0, %c0_i32, %c0_i32_0 : i32, i32, i32
  }
}

</mosaic_0001>

<llo_original>
// kernel: tpu_custom_call.1
$region0: #{tpu_custom_call.1}
  #allocation0 [shape = 'u32[]', space=smem, size = 0x4, offset = 0x4, fixed_abs, tag = 'smem constant byte address 0x4 - core index']
  #allocation1 [shape = 'u32[72,128]{1,0:T(1,128)}', space=vmem, size = 0x9000, scoped, tag = 'internal scratch']
  %s0 = inlined_call_operand.vmem [shape: bf16[40,64], index: 0, kind: input, shape index: {}]
  %s1 = inlined_call_operand.vmem [shape: bf16[128,64], index: 1, kind: input, shape index: {}]
  %s2 = inlined_call_operand.vmem [shape: f32[4,64], index: 2, kind: input, shape index: {}]
  %s3 = inlined_call_operand.hbm [shape: f32[2,1,24], index: 3, kind: output, shape index: {}]
  %s4 = sld [smem:[#allocation0]]
  $region45: #{tpu_custom_call.1} parent=0
    _
  %s6 = ssub.s32 1, %s4
  %s7 = scalar_select 0, %s6, %s4
  $region1: #{tpu_custom_call.1} parent=0
    #allocation2 [shape = 'u8[1024]{0}', space=vmem, size = 0x400, scoped, tag = 'output window, operand 0']
    #allocation3 [shape = 's32[2]{0}', space=sflag, size = 0x8, scoped, tag = 'scoped memory for tpu_custom_call.1']
    %8 = vsyncpa [#allocation3], 0
    %s9 = scalar_lea.sflag [#allocation3], 1
    %10 = vsyncpa %s9, 0
    loop: start=0, step=1, limit=4
    $region2: #{tpu_custom_call.1} parent=1 // loop_pre_header
      _
    $region3: #{tpu_custom_call.1} parent=1 // loop_header
      %s12 = sphi 0, %s16
      %p13 = scmp.ge.s32.totalorder %s12, 4
      %s22 = sphi 0, %s24
      %s25 = sphi 0, %s22
      %s26 = sphi 0, %s25
      %s42 = sphi 0, %s26
      %s46 = sphi 0, %s46
      %s48 = sphi 0, %s46
      %s49 = sphi 0, %s48
      %s63 = sphi 0, %s49
      %s67 = sphi 0, %s67
      %s69 = sphi 0, %s67
      %s70 = sphi 0, %s69
      %s84 = sphi 0, %s70
      %s90 = sphi 0, %s92
      %s93 = sphi 0, %s90
      %s94 = sphi 0, %s93
      %s110 = sphi 0, %s94
    $region4: #{tpu_custom_call.1} parent=1 // loop_header_branch
      %15 = sbr.rel (%p13) target = $region8
    $region5: #{tpu_custom_call.1} parent=1 // loop_body
      %s17 = ssub.s32 %s12, 1
      %s18 = ssub.s32 %s12, 2
      %s19 = sadd.s32 %s12, 1
      %s20 = ssub.s32 %s12, %s19
      %p21 = scmp.eq.s32.totalorder %s20, 0
      %s23 = sadd.s32 %s22, 1
      %s24 = scalar_select %p21, %s22, %s23
      %p27 = pneg %p21
      %p28 = scmp.eq.s32.totalorder %s12, 1
      %p29 = por %p27, %p28
      %p30 = scmp.ne.s32.totalorder %s22, %s25
      %p31 = scmp.eq.s32.totalorder %s12, 0
      %p32 = por %p30, %p31
      %p33 = scmp.ne.s32.totalorder %s22, %s25
      %p34 = scmp.eq.s32.totalorder %s17, 1
      %p35 = por %p33, %p34
      %p36 = scmp.ne.s32.totalorder %s25, %s26
      %p37 = scmp.eq.s32.totalorder %s17, 0
      %p38 = por %p36, %p37
      %p39 = scmp.ne.s32.totalorder %s25, %s26
      %p40 = scmp.eq.s32.totalorder %s18, 1
      %p41 = por %p39, %p40
      %p43 = scmp.ne.s32.totalorder %s26, %s42
      %p44 = scmp.eq.s32.totalorder %s18, 0
      %p45 = por %p43, %p44
      %s47 = sadd.s32 %s46, 1
      %p50 = scmp.eq.s32.totalorder %s12, 1
      %p51 = scmp.ne.s32.totalorder %s46, %s48
      %p52 = scmp.eq.s32.totalorder %s12, 0
      %p53 = por %p51, %p52
      %p54 = scmp.ne.s32.totalorder %s46, %s48
      %p55 = scmp.eq.s32.totalorder %s17, 1
      %p56 = por %p54, %p55
      %p57 = scmp.ne.s32.totalorder %s48, %s49
      %p58 = scmp.eq.s32.totalorder %s17, 0
      %p59 = por %p57, %p58
      %p60 = scmp.ne.s32.totalorder %s48, %s49
      %p61 = scmp.eq.s32.totalorder %s18, 1
      %p62 = por %p60, %p61
      %p64 = scmp.ne.s32.totalorder %s49, %s63
      %p65 = scmp.eq.s32.totalorder %s18, 0
      %p66 = por %p64, %p65
      %s68 = sadd.s32 %s67, 1
      %p71 = scmp.eq.s32.totalorder %s12, 1
      %p72 = scmp.ne.s32.totalorder %s67, %s69
      %p73 = scmp.eq.s32.totalorder %s12, 0
      %p74 = por %p72, %p73
      %p75 = scmp.ne.s32.totalorder %s67, %s69
      %p76 = scmp.eq.s32.totalorder %s17, 1
      %p77 = por %p75, %p76
      %p78 = scmp.ne.s32.totalorder %s69, %s70
      %p79 = scmp.eq.s32.totalorder %s17, 0
      %p80 = por %p78, %p79
      %p81 = scmp.ne.s32.totalorder %s69, %s70
      %p82 = scmp.eq.s32.totalorder %s18, 1
      %p83 = por %p81, %p82
      %p85 = scmp.ne.s32.totalorder %s70, %s84
      %p86 = scmp.eq.s32.totalorder %s18, 0
      %p87 = por %p85, %p86
      %s88 = ssub.s32 %s12, %s19
      %p89 = scmp.eq.s32.totalorder %s88, 0
      %s91 = sadd.s32 %s90, 1
      %s92 = scalar_select %p89, %s90, %s91
      %p95 = pneg %p89
      %p96 = scmp.eq.s32.totalorder %s12, 1
      %p97 = por %p95, %p96
      %p98 = scmp.ne.s32.totalorder %s90, %s93
      %p99 = scmp.eq.s32.totalorder %s12, 0
      %p100 = por %p98, %p99
      %p101 = scmp.ne.s32.totalorder %s90, %s93
      %p102 = scmp.eq.s32.totalorder %s17, 1
      %p103 = por %p101, %p102
      %p104 = scmp.ne.s32.totalorder %s93, %s94
      %p105 = scmp.eq.s32.totalorder %s17, 0
      %p106 = por %p104, %p105
      %p107 = scmp.ne.s32.totalorder %s93, %s94
      %p108 = scmp.eq.s32.totalorder %s18, 1
      %p109 = por %p107, %p108
      %p111 = scmp.ne.s32.totalorder %s94, %s110
      %p112 = scmp.eq.s32.totalorder %s18, 0
      %p113 = por %p111, %p112
      %p114 = scmp.le.s32.totalorder 1, %s12
      %p115 = scmp.lt.s32.totalorder %s12, 3
      %p116 = pnand %p114, %p115
      %p117 = pneg %p116
      // Predicated region
      $region9: #{tpu_custom_call.1} parent=5 // pred_check
        _
      $region10: #{tpu_custom_call.1} parent=5 // pred_check_branch
        %119 = sbr.rel (%p116) target = $region12
      $region11: #{tpu_custom_call.1} parent=5 // pred_region
        %s120 = ssub.s32 %s12, 1
        // Predicated region
        $region13: #{tpu_custom_call.1} parent=11 // pred_check
          %p121 = pneg %p59
        $region14: #{tpu_custom_call.1} parent=11 // pred_check_branch
          %123 = sbr.rel (%p121) target = $region16
        $region15: #{tpu_custom_call.1} parent=11 // pred_region
          _
        $region16: #{tpu_custom_call.1} parent=11 // pred_fallthru
          _
        // Predicated region
        $region17: #{tpu_custom_call.1} parent=11 // pred_check
          %p124 = pneg %p80
        $region18: #{tpu_custom_call.1} parent=11 // pred_check_branch
          %126 = sbr.rel (%p124) target = $region20
        $region19: #{tpu_custom_call.1} parent=11 // pred_region
          _
        $region20: #{tpu_custom_call.1} parent=11 // pred_fallthru
          _
      $region12: #{tpu_custom_call.1} parent=5 // pred_fallthru
        _
      %p127 = scmp.lt.s32.totalorder %s12, 2
      // Predicated region
      $region21: #{tpu_custom_call.1} parent=5 // pred_check
        %p128 = pneg %p127
      $region22: #{tpu_custom_call.1} parent=5 // pred_check_branch
        %130 = sbr.rel (%p128) target = $region24
      $region23: #{tpu_custom_call.1} parent=5 // pred_region
        // Predicated region
        $region25: #{tpu_custom_call.1} parent=23 // pred_check
          %p131 = pneg %p32
        $region26: #{tpu_custom_call.1} parent=23 // pred_check_branch
          %133 = sbr.rel (%p131) target = $region28
        $region27: #{tpu_custom_call.1} parent=23 // pred_region
          %s134 = smul.u32 3, %s12
          %s135 = ssub.s32 5, %s134
          %p136 = scmp.lt.s32.totalorder %s135, 3
          %s137 = scalar_select %p136, %s135, 3
          %s138 = smul.u32 4, %s137
          %p139 = scmp.lt.s32.totalorder %s134, 4
          %s140 = scalar_select %p139, %s134, 4
          %s141 = smul.addr %s140, 4
          %s142 = scalar_lea.vmem %s0, %s141
          %s143 = smul.u32 3, %s12
          %s144 = ssub.s32 5, %s143
          %p145 = scmp.lt.s32.totalorder %s144, 3
          %s146 = scalar_select %p145, %s144, 3
          %s147 = smul.u32 4, %s146
        $region28: #{tpu_custom_call.1} parent=23 // pred_fallthru
          _
      $region24: #{tpu_custom_call.1} parent=5 // pred_fallthru
        _
      %p148 = scmp.le.s32.totalorder 1, %s12
      %p149 = scmp.lt.s32.totalorder %s12, 3
      %p150 = pnand %p148, %p149
      %p151 = pneg %p150
      // Predicated region
      $region29: #{tpu_custom_call.1} parent=5 // pred_check
        _
      $region30: #{tpu_custom_call.1} parent=5 // pred_check_branch
        %153 = sbr.rel (%p150) target = $region32
      $region31: #{tpu_custom_call.1} parent=5 // pred_region
        %s154 = ssub.s32 %s12, 1
        %s155 = smul.u32 3, %s17
        %s156 = ssub.s32 5, %s155
        %p157 = scmp.lt.s32.totalorder %s156, 3
        %s158 = scalar_select %p157, %s156, 3
        %s159 = smul.u32 4, %s158
        %p160 = scmp.lt.s32.totalorder %s155, 4
        %s161 = scalar_select %p160, %s155, 4
        %s162 = smul.addr %s161, 4
        %s163 = scalar_lea.vmem %s0, %s162
        %p164 = pneg %p38
        %p165 = pneg %p35
        %p166 = pneg %p59
        %p167 = pneg %p56
        %p168 = pneg %p80
        %p169 = pneg %p77
        %p170 = pneg %p106
        %p171 = pneg %p103
        %s172 = sand.u32 %s93, 1
        %s173 = scalar_lea.sflag [#allocation3], %s172
        %s174 = sand.u32 %s93, 1
        %s175 = scalar_lea.vmem [#allocation2], %s174
        %s176 = smul.u32 3, %s17
        %s177 = ssub.s32 5, %s176
        %p178 = scmp.lt.s32.totalorder %s177, 3
        %s179 = scalar_select %p178, %s177, 3
        %s180 = smul.u32 4, %s179
        %p181 = scmp.lt.s32.totalorder %s176, 4
        %s182 = scalar_select %p181, %s176, 4
        %s183 = smul.addr %s182, 4
        %s184 = scalar_lea.vmem %s0, %s183
        %s185 = smul.u32 3, %s17
        %s186 = ssub.s32 5, %s185
        %p187 = scmp.lt.s32.totalorder %s186, 3
        %s188 = scalar_select %p187, %s186, 3
        %s189 = smul.u32 4, %s188
        %v191 = vld [vmem:[%s184] sm:$0xf]
        %v192 = vld [vmem:[%s184 + $0x4] sm:$0xf]
        %v193 = vld [vmem:[%s184 + $0x8] sm:$0xf]
        %v194 = vunpack.c.l.bf16 %v191
        %v195 = vunpack.c.l.bf16 %v192
        %v196 = vunpack.c.l.bf16 %v193
        %vm197 = vcmask 523264
        %v198 = vsel %vm197, %v194, 0.0
        %199 = vadd.xlane.f32.xlu0 %v198
        %v200 = vpop.xlane.xlu0 %199
        %v201 = vsel %vm197, %v195, 0.0
        %202 = vadd.xlane.f32.xlu0 %v201
        %v203 = vpop.xlane.xlu0 %202
        %v204 = vsel %vm197, %v196, 0.0
        %205 = vadd.xlane.f32.xlu0 %v204
        %v206 = vpop.xlane.xlu0 %205
        %v207 = vrcp.pop 64.0
        %v208 = vmul.f32 64.0, %v207
        %v209 = vsub.f32 1.0, %v208
        %v210 = vmul.f32 %v207, %v209
        %v211 = vadd.f32 %v207, %v210
        %vm212 = vweird.f32 %v207
        %v213 = vsel %vm212, %v207, %v211
        %v214 = vmul.f32 %v200, %v213
        %v215 = vmul.f32 %v203, %v213
        %v216 = vmul.f32 %v206, %v213
        %v217 = vsub.f32 %v194, %v214
        %v218 = vsub.f32 %v195, %v215
        %v219 = vsub.f32 %v196, %v216
        %v220 = vmul.f32 %v217, %v217
        %v221 = vmul.f32 %v218, %v218
        %v222 = vmul.f32 %v219, %v219
        %v223 = vsel %vm197, %v220, 0.0
        %224 = vadd.xlane.f32.xlu0 %v223
        %v225 = vpop.xlane.xlu0 %224
        %v226 = vsel %vm197, %v221, 0.0
        %227 = vadd.xlane.f32.xlu0 %v226
        %v228 = vpop.xlane.xlu0 %227
        %v229 = vsel %vm197, %v222, 0.0
        %230 = vadd.xlane.f32.xlu0 %v229
        %v231 = vpop.xlane.xlu0 %230
        %v232 = vmul.f32 %v225, %v213
        %v233 = vmul.f32 %v228, %v213
        %v234 = vmul.f32 %v231, %v213
        %v235 = vadd.f32 %v232, 1e-05
        %v236 = vadd.f32 %v233, 1e-05
        %v237 = vadd.f32 %v234, 1e-05
        %v238 = vrsqrt.pop %v235
        %v239 = vmul.f32 %v238, %v235
        %v240 = vmul.f32 %v239, %v238
        %v241 = vmul.f32 0.5, %v240
        %v242 = vsub.f32 1.5, %v241
        %v243 = vmul.f32 %v238, %v242
        %vm244 = vweird.f32 %v235
        %vm245 = vweird.f32 %v238
        %vm246 = vmor %vm244, %vm245
        %v247 = vsel %vm246, %v238, %v243
        %v248 = vrsqrt.pop %v236
        %v249 = vmul.f32 %v248, %v236
        %v250 = vmul.f32 %v249, %v248
        %v251 = vmul.f32 0.5, %v250
        %v252 = vsub.f32 1.5, %v251
        %v253 = vmul.f32 %v248, %v252
        %vm254 = vweird.f32 %v236
        %vm255 = vweird.f32 %v248
        %vm256 = vmor %vm254, %vm255
        %v257 = vsel %vm256, %v248, %v253
        %v258 = vrsqrt.pop %v237
        %v259 = vmul.f32 %v258, %v237
        %v260 = vmul.f32 %v259, %v258
        %v261 = vmul.f32 0.5, %v260
        %v262 = vsub.f32 1.5, %v261
        %v263 = vmul.f32 %v258, %v262
        %vm264 = vweird.f32 %v237
        %vm265 = vweird.f32 %v258
        %vm266 = vmor %vm264, %vm265
        %v267 = vsel %vm266, %v258, %v263
        %v268 = vmul.f32 %v217, %v247
        %v269 = vmul.f32 %v218, %v257
        %v270 = vmul.f32 %v219, %v267
        %v271 = vld [vmem:[%s1] sm:$0xf]
        %v272 = vld [vmem:[%s1 + $0x4] sm:$0xf]
        %v273 = vld [vmem:[%s1 + $0x8] sm:$0xf]
        %v274 = vld [vmem:[%s1 + $0xc] sm:$0xf]
        %v275 = vld [vmem:[%s1 + $0x10] sm:$0xf]
        %v276 = vld [vmem:[%s1 + $0x14] sm:$0xf]
        %v277 = vld [vmem:[%s1 + $0x18] sm:$0xf]
        %v278 = vld [vmem:[%s1 + $0x1c] sm:$0xf]
        %v279 = vld [vmem:[%s1 + $0x20] sm:$0xf]
        %v280 = vld [vmem:[%s1 + $0x24] sm:$0xf]
        %v281 = vld [vmem:[%s1 + $0x28] sm:$0xf]
        %v282 = vld [vmem:[%s1 + $0x2c] sm:$0xf]
        %v283 = vld [vmem:[%s1 + $0x30] sm:$0xf]
        %v284 = vld [vmem:[%s1 + $0x34] sm:$0xf]
        %v285 = vld [vmem:[%s1 + $0x38] sm:$0xf]
        %v286 = vld [vmem:[%s1 + $0x3c] sm:$0xf]
        %v287 = vld [vmem:[%s2] sm:$0x1]
        %v288 = vld [vmem:[%s2 + $0x1] sm:$0x1]
        %v289 = vld [vmem:[%s2 + $0x2] sm:$0x1]
        %v290 = vld [vmem:[%s2 + $0x3] sm:$0x1]
        %v291 = vpack.c.bf16 %v269, %v268
        %v292 = vpack.c.bf16 %v270, %v270
        %v293 = vperm.slane %v287, 0
        %v302 = vunpack.c.l.b16 %v271
        %v303 = vunpack.c.l.b16 %v272
        %v304 = vunpack.c.l.b16 %v273
        %v305 = vunpack.c.l.b16 %v274
        %v306 = vunpack.c.l.b16 %v275
        %v307 = vunpack.c.l.b16 %v276
        %v308 = vunpack.c.l.b16 %v277
        %v309 = vunpack.c.l.b16 %v278
        %v310 = vpack.c.b16 %v303, %v302
        %v311 = vpack.c.b16 %v305, %v304
        %v312 = vpack.c.b16 %v307, %v306
        %v313 = vpack.c.b16 %v309, %v308
        %v319 = vsel %vm197, %v291, 0
        %v322 = vsel %vm197, %v292, 0
        %324 = vmatpush.bf16.msra.mxu0 0
        %325 = vmatpush.bf16.msra.mxu0 0
        %326 = vmatpush.bf16.msra.mxu0 0
        %327 = vmatpush.bf16.msra.mxu0 0
        %328 = vmatpush.bf16.msra.mxu0 %v313
        %329 = vmatpush.bf16.msra.mxu0 %v312
        %330 = vmatpush.bf16.msra.mxu0 %v311
        %331 = vmatpush.bf16.msra.mxu0 %v310
        %332 = vmatmul.bf16.gmra.mxu0 %v319
        %v333 = vpop.f32.mrf.mxu0
        %v334 = vadd.f32 %v293, %v333
        %v335 = vpop.f32.mrf.mxu0
        %v336 = vadd.f32 %v293, %v335
        %337 = vmatmul.bf16.gmra.mxu0 %v322
        %v338 = vpop.f32.mrf.mxu0
        %v339 = vadd.f32 %v293, %v338
        %v340 = vpop.f32.mrf.mxu0
        %341 = vdwg.mxu0
        %v342 = vpack.c.bf16 %v336, %v334
        %v343 = vpack.c.bf16 %v339, %v339
        %v344 = vunpack.c.l.bf16 %v342
        %v345 = vunpack.c.h.bf16 %v342
        %v346 = vunpack.c.l.bf16 %v343
        %v347 = vtanh.pop %v344
        %v348 = vtanh.pop %v345
        %v349 = vtanh.pop %v346
        %v350 = vpack.c.bf16 %v348, %v347
        %v351 = vpack.c.bf16 %v349, %v349
        %v352 = vperm.slane %v288, 0
        %v361 = vunpack.c.l.b16 %v279
        %v362 = vunpack.c.l.b16 %v280
        %v363 = vunpack.c.l.b16 %v281
        %v364 = vunpack.c.l.b16 %v282
        %v365 = vunpack.c.l.b16 %v283
        %v366 = vunpack.c.l.b16 %v284
        %v367 = vunpack.c.l.b16 %v285
        %v368 = vunpack.c.l.b16 %v286
        %v369 = vpack.c.b16 %v362, %v361
        %v370 = vpack.c.b16 %v364, %v363
        %v371 = vpack.c.b16 %v366, %v365
        %v372 = vpack.c.b16 %v368, %v367
        %v378 = vsel %vm197, %v350, 0
        %v381 = vsel %vm197, %v351, 0
        %383 = vmatpush.bf16.msra.mxu0 0
        %384 = vmatpush.bf16.msra.mxu0 0
        %385 = vmatpush.bf16.msra.mxu0 0
        %386 = vmatpush.bf16.msra.mxu0 0
        %387 = vmatpush.bf16.msra.mxu0 %v372
        %388 = vmatpush.bf16.msra.mxu0 %v371
        %389 = vmatpush.bf16.msra.mxu0 %v370
        %390 = vmatpush.bf16.msra.mxu0 %v369
        %391 = vmatmul.bf16.gmra.mxu0 %v378
        %v392 = vpop.f32.mrf.mxu0
        %v393 = vadd.f32 %v352, %v392
        %v394 = vpop.f32.mrf.mxu0
        %v395 = vadd.f32 %v352, %v394
        %396 = vmatmul.bf16.gmra.mxu0 %v381
        %v397 = vpop.f32.mrf.mxu0
        %v398 = vadd.f32 %v352, %v397
        %v399 = vpop.f32.mrf.mxu0
        %400 = vdwg.mxu0
        %v401 = vpack.c.bf16 %v395, %v393
        %v402 = vpack.c.bf16 %v398, %v398
        %v403 = vunpack.c.l.bf16 %v401
        %v404 = vunpack.c.h.bf16 %v401
        %v405 = vunpack.c.l.bf16 %v402
        %v406 = vtanh.pop %v403
        %v407 = vtanh.pop %v404
        %v408 = vtanh.pop %v405
        %v409 = vpack.c.bf16 %v407, %v406
        %v410 = vpack.c.bf16 %v408, %v408
        %v411 = vpack.c.bf16 %v289, %v289
        %413 = vset.pattern.permute.xlu0 0
        %414 = vperm.xlu0 %413, %v290
        %v415 = vpop.permute.xlu0 %414
        %v418 = vsel %vm197, %v411, 0
        %v421 = vsel %vm197, %v409, 0
        %v424 = vsel %vm197, %v410, 0
        %426 = vmatpush.bf16.xpose.msra.mxu0 0
        %427 = vmatpush.bf16.xpose.msra.mxu0 0
        %428 = vmatpush.bf16.xpose.msra.mxu0 0
        %429 = vmatpush.bf16.xpose.msra.mxu0 0
        %430 = vmatpush.bf16.xpose.msra.mxu0 0
        %431 = vmatpush.bf16.xpose.msra.mxu0 0
        %432 = vmatpush.bf16.xpose.msra.mxu0 %v424
        %433 = vmatpush.bf16.xpose.msra.mxu0 %v421
        %434 = vmatmul.bf16.gmra.mxu0 %v418
        %v435 = vpop.f32.mrf.mxu0
        %v436 = vadd.f32 %v415, %v435
        %v437 = vpop.f32.mrf.mxu0
        %438 = vdwg.mxu0
        %vm439 = vcmask 188416
        %440 = vst.msk [vmem:[%s175] sm:$0x1] %vm439, %v436
        %s441 = sand.u32 %s93, 1
        %s442 = scalar_lea.sflag [#allocation3], %s441
        %s443 = sand.u32 %s93, 1
        %s444 = scalar_lea.vmem [#allocation2], %s443
        // Predicated region
        $region33: #{tpu_custom_call.1} parent=31 // pred_check
          %p445 = pneg %p103
        $region34: #{tpu_custom_call.1} parent=31 // pred_check_branch
          %447 = sbr.rel (%p445) target = $region36
        $region35: #{tpu_custom_call.1} parent=31 // pred_region
          %449 = vsyncadd %s442, 0
          %s450 = scalar_lea.hbm %s3, %s17
          %s452 = sshll.u32 %s444, 4
          %s453 = int_to_ptr.vmem [resolvable:$true] %s452
          %s454 = sshll.u32 %s450, 4
          %s455 = int_to_ptr.hbm [resolvable:$true] %s454
          %457 = dma.vmem_to_hbm [thread:$0]  %s453, 16, %s455, %s442
        $region36: #{tpu_custom_call.1} parent=31 // pred_fallthru
          _
      $region32: #{tpu_custom_call.1} parent=5 // pred_fallthru
        _
      %p458 = scmp.le.s32.totalorder 2, %s12
      // Predicated region
      $region37: #{tpu_custom_call.1} parent=5 // pred_check
        %p459 = pneg %p458
      $region38: #{tpu_custom_call.1} parent=5 // pred_check_branch
        %461 = sbr.rel (%p459) target = $region40
      $region39: #{tpu_custom_call.1} parent=5 // pred_region
        %s462 = ssub.s32 %s12, 2
        // Predicated region
        $region41: #{tpu_custom_call.1} parent=39 // pred_check
          %p463 = pneg %p109
        $region42: #{tpu_custom_call.1} parent=39 // pred_check_branch
          %465 = sbr.rel (%p463) target = $region44
        $region43: #{tpu_custom_call.1} parent=39 // pred_region
          %s466 = sand.u32 %s94, 1
          %s467 = scalar_lea.sflag [#allocation3], %s466
          %s468 = sand.u32 %s94, 1
          %s469 = scalar_lea.vmem [#allocation2], %s468
          %471 = dma.done %s467, 16
        $region44: #{tpu_custom_call.1} parent=39 // pred_fallthru
          _
      $region40: #{tpu_custom_call.1} parent=5 // pred_fallthru
        _
    $region6: #{tpu_custom_call.1} parent=1 // loop_footer
      %s16 = sadd.s32 1, %s12
    $region7: #{tpu_custom_call.1} parent=1 // loop_footer_branch
      %11 = sbr.rel target = $region3
    $region8: #{tpu_custom_call.1} parent=1 // loop_exit
      _
    %472 = vsyncpa [#allocation3], 1
    %s473 = scalar_lea.sflag [#allocation3], 1
    %474 = vsyncpa %s473, 1

</llo_original>
